<compile_context>
chip_gen: v6e
topology: v6e:2x2x1
jax: 0.10.0
libtpu: 0.0.40
codegen_flags: <defaults>
</compile_context>

<pallas_src>
import math
import jax
import jax.numpy as jnp
from jax.experimental import pallas as pl
from jax.experimental.pallas import tpu as pltpu

NEG_SLOPE = 0.45
C_OUT = 20      # conv3 out-channels == linear1 in-features
LIN_OUT = 64    # linear1 out-features


# ---------------------------------------------------------------------------
# Single fused kernel: folded conv-chain affine + leaky-relu + Linear(20, 64)
# ---------------------------------------------------------------------------
def fused_kernel(x_ref, weff_ref, beff_ref, wlb_ref, blb_ref, o_ref):
    # x_ref:    (N, H//2, 2W)     input pixels, two h-rows packed along lanes (C_in == 1)
    # weff_ref: (C, 1, 1)         folded conv-chain per-channel scale
    # beff_ref: (C, 1, 1)         folded conv-chain per-channel bias
    # wlb_ref:  (2W, 128) bf16    block-diag([wl, wl]) linear weight (in, out layout)
    # blb_ref:  (1, 128)  f32     [bl, bl]
    # o_ref:    (N*C*(H//2), 128) f32
    x = x_ref[...]
    n, hh, w2 = x.shape
    c = weff_ref.shape[0]

    # Folded 1x1-conv chain (pure affine; no nonlinearity between convs).
    # Per-channel scalars are broadcast in-kernel (cheap VPU splats) instead
    # of shipping pre-broadcast tables from HBM.  Channel axis inserted ahead
    # of H so output rows land directly in (n, c, h) order -- no transpose.
    h = x[:, None, :, :] * weff_ref[...][None] + beff_ref[...][None]   # (N, C, Hh, 2W)

    # leaky_relu(0.45) written exactly as where(v > 0, v, v * slope)
    h = jnp.where(h > 0, h, h * NEG_SLOPE)

    # Linear(20, 64) over the width dim, applied to both packed h-rows of a
    # row at once via the block-diagonal weight -> lane-dense (rows, 128) out.
    # Leading-dim-only merge; bf16 operands, f32 accumulation.
    hm = h.reshape(n * c * hh, w2).astype(jnp.bfloat16)
    o_ref[...] = (
        jnp.dot(hm, wlb_ref[...], preferred_element_type=jnp.float32) + blb_ref[...]
    )


def fused_forward_pallas(xp, weff, beff, wl_blk, bl_blk):
    n, hh, _ = xp.shape
    c = weff.shape[0]
    rows = n * c * hh
    vmem = pl.BlockSpec(memory_space=pltpu.MemorySpace.VMEM)
    # Whole problem is VMEM-resident -> no grid, single invocation, single
    # DMA in/out, no pipeline prologue/epilogue overhead.
    # TODO(synk): if N*H grows, add a 1-D "parallel" grid over output rows
    # (blocks of ~512 rows x 128 lanes) to shard across v7x's two TensorCores
    # and restore DMA/compute overlap; budget per-block VMEM for v7x (64 MiB).
    return pl.pallas_call(
        fused_kernel,
        out_shape=jax.ShapeDtypeStruct((rows, 2 * LIN_OUT), jnp.float32),
        in_specs=[vmem, vmem, vmem, vmem, vmem],
        out_specs=vmem,
    )(xp, weff, beff, wl_blk, bl_blk)


# ---------------------------------------------------------------------------
# Parameters (deterministic torch-style uniform init).
# Conv weights stored as (Cin, Cout); linear weight stored transposed (in, out).
# ---------------------------------------------------------------------------
def init_params(key):
    ks = jax.random.split(key, 8)

    def unif(k, shape, fan_in):
        bound = 1.0 / math.sqrt(fan_in)
        return jax.random.uniform(k, shape, jnp.float32, -bound, bound)

    w1 = unif(ks[0], (1, 16), 1)       # conv1: 1 -> 16, 1x1
    b1 = unif(ks[1], (1, 16), 1)
    w2 = unif(ks[2], (16, 64), 16)     # conv2: 16 -> 64, 1x1
    b2 = unif(ks[3], (1, 64), 16)
    w3 = unif(ks[4], (64, 20), 64)     # conv3: 64 -> 20, 1x1
    b3 = unif(ks[5], (1, 20), 64)
    wl = unif(ks[6], (20, 64), 20)     # linear1: 20 -> 64 (stored transposed)
    bl = unif(ks[7], (1, 64), 20)
    return w1, b1, w2, b2, w3, b3, wl, bl


def prepare_params(params):
    """One-time parameter folding, hoisted out of the per-call forward path.

    Folds the activation-free 1x1-conv chain into a single per-channel affine
    (at HIGHEST precision) and builds the block-diagonal linear weight/bias.
    """
    w1, b1, w2, b2, w3, b3, wl, bl = params
    hp = jax.lax.Precision.HIGHEST
    weff = jnp.dot(jnp.dot(w1, w2, precision=hp), w3, precision=hp)            # (1, 20)
    beff = jnp.dot(jnp.dot(b1, w2, precision=hp) + b2, w3, precision=hp) + b3  # (1, 20)

    W = wl.shape[0]
    wl_blk = jnp.zeros((2 * W, 2 * LIN_OUT), jnp.float32)
    wl_blk = wl_blk.at[:W, :LIN_OUT].set(wl)
    wl_blk = wl_blk.at[W:, LIN_OUT:].set(wl)
    bl_blk = jnp.concatenate([bl, bl], axis=1)                                 # (1, 128)

    return (
        weff.reshape(C_OUT, 1, 1).astype(jnp.float32),
        beff.reshape(C_OUT, 1, 1).astype(jnp.float32),
        wl_blk.astype(jnp.bfloat16),     # bf16 MXU operand (f32 accumulation)
        bl_blk.astype(jnp.float32),
    )


@jax.jit
def model_forward(x_nchw, prepped):
    weff, beff, wl_blk, bl_blk = prepped
    N, C, H, W = x_nchw.shape          # C == 1, W == 20 (required by Linear(20, .))
    assert C == 1 and 2 * W == wl_blk.shape[0] and H % 2 == 0

    # View the (N, 1, H, W) input as (N, H//2, 2W): contiguous, free (C == 1).
    xp = x_nchw.reshape(N, H // 2, 2 * W)

    z = fused_forward_pallas(xp, weff, beff, wl_blk, bl_blk)   # (N*20*H//2, 128)

    # dropout1/2/3 -> identity (eval).  Row r = (n, c, h//2); the two h-parity
    # results sit back to back in the lane dim, so this contiguous reshape is
    # exactly v8 with shape (N, 20, H, 64).
    # TODO(synk): second self.linear1(v10) is shape-invalid in the reference
    # module (last dim 64 != in_features 20); returning v8.
    return z.reshape(N, C_OUT, H, LIN_OUT)


# ---------------------------------------------------------------------------
# Pure-JAX (non-Pallas) reference of the PyTorch forward up to v8, for checking
# ---------------------------------------------------------------------------
def reference_forward(x_nchw, params):
    w1, b1, w2, b2, w3, b3, wl, bl = params
    N, C, H, W = x_nchw.shape
    hp = jax.lax.Precision.HIGHEST
    x_pix = jnp.transpose(x_nchw, (0, 2, 3, 1)).reshape(N * H * W, C)   # (P, 1)
    h1 = x_pix * w1 + b1                                    # conv1 (1x1)
    h2 = jnp.dot(h1, w2, precision=hp) + b2                 # conv2 (1x1)
    h3 = jnp.dot(h2, w3, precision=hp) + b3                 # conv3 (1x1)
    v6 = jnp.where(h3 > 0, h3, h3 * NEG_SLOPE)              # leaky_relu(0.45)
    v7 = jnp.transpose(v6.reshape(N, H, W, C_OUT), (0, 3, 1, 2))        # (N, 20, H, W)
    v8 = jnp.einsum("nchw,wo->ncho", v7, wl, precision=hp) + bl.reshape(LIN_OUT)
    return v8


if __name__ == "__main__":
    key = jax.random.PRNGKey(0)
    k_params, k_x = jax.random.split(key)
    params = init_params(k_params)
    prepped = prepare_params(params)   # one-time folding, outside the forward

    # Input: N=2, Cin=1, H=16, W=20 (W must equal 20 for Linear(20, 64)).
    x = jax.random.normal(k_x, (2, 1, 16, 20), jnp.float32)

    out = jax.block_until_ready(model_forward(x, prepped))
    assert out.shape == (2, C_OUT, 16, LIN_OUT), out.shape

    ref = jax.block_until_ready(reference_forward(x, params))
    max_err = float(jnp.max(jnp.abs(out - ref)))
    assert max_err < 5e-2, f"max abs err vs reference: {max_err}"

    print("KERNEL_OK")
</pallas_src>

<mosaic_0001>
module attributes {stable_mosaic.version = 11 : i64} {
  func.func @fused_kernel(%arg0: memref<2x8x40xf32, #tpu.memory_space<vmem>>, %arg1: memref<20x1x1xf32, #tpu.memory_space<vmem>>, %arg2: memref<20x1x1xf32, #tpu.memory_space<vmem>>, %arg3: memref<40x128xbf16, #tpu.memory_space<vmem>>, %arg4: memref<1x128xf32, #tpu.memory_space<vmem>>, %arg5: memref<320x128xf32, #tpu.memory_space<vmem>>) attributes {dimension_semantics = [], scalar_prefetch = 0 : i64, scratch_operands = 0 : i64, tpu.core_type = #tpu.core_type<tc>} {
    %c0 = arith.constant 0 : index
    %c0_0 = arith.constant 0 : index
    %c0_1 = arith.constant 0 : index
    %0 = vector.load %arg0[%c0, %c0_0, %c0_1] : memref<2x8x40xf32, #tpu.memory_space<vmem>>, vector<2x8x40xf32>
    %1 = vector.shape_cast %0 : vector<2x8x40xf32> to vector<2x1x8x40xf32>
    %c0_2 = arith.constant 0 : index
    %c0_3 = arith.constant 0 : index
    %c0_4 = arith.constant 0 : index
    %2 = vector.load %arg1[%c0_2, %c0_3, %c0_4] : memref<20x1x1xf32, #tpu.memory_space<vmem>>, vector<20x1x1xf32>
    %3 = vector.shape_cast %2 : vector<20x1x1xf32> to vector<1x20x1x1xf32>
    %4 = vector.broadcast %1 : vector<2x1x8x40xf32> to vector<2x20x8x40xf32>
    %5 = vector.broadcast %3 : vector<1x20x1x1xf32> to vector<2x20x8x40xf32>
    %6 = arith.mulf %4, %5 : vector<2x20x8x40xf32>
    %c0_5 = arith.constant 0 : index
    %c0_6 = arith.constant 0 : index
    %c0_7 = arith.constant 0 : index
    %7 = vector.load %arg2[%c0_5, %c0_6, %c0_7] : memref<20x1x1xf32, #tpu.memory_space<vmem>>, vector<20x1x1xf32>
    %8 = vector.shape_cast %7 : vector<20x1x1xf32> to vector<1x20x1x1xf32>
    %9 = vector.broadcast %8 : vector<1x20x1x1xf32> to vector<2x20x8x40xf32>
    %10 = arith.addf %6, %9 : vector<2x20x8x40xf32>
    %cst = arith.constant 0.000000e+00 : f32
    %11 = vector.broadcast %cst : f32 to vector<2x20x8x40xf32>
    %12 = arith.cmpf ogt, %10, %11 : vector<2x20x8x40xf32>
    %cst_8 = arith.constant 4.500000e-01 : f32
    %13 = vector.broadcast %cst_8 : f32 to vector<2x20x8x40xf32>
    %14 = arith.mulf %10, %13 : vector<2x20x8x40xf32>
    %15 = arith.select %12, %10, %14 : vector<2x20x8x40xi1>, vector<2x20x8x40xf32>
    %16 = vector.shape_cast %15 : vector<2x20x8x40xf32> to vector<320x40xf32>
    %17 = arith.truncf %16 : vector<320x40xf32> to vector<320x40xbf16>
    %c0_9 = arith.constant 0 : index
    %c0_10 = arith.constant 0 : index
    %18 = vector.load %arg3[%c0_9, %c0_10] : memref<40x128xbf16, #tpu.memory_space<vmem>>, vector<40x128xbf16>
    %cst_11 = arith.constant dense<0.000000e+00> : vector<320x128xf32>
    %19 = tpu.matmul %17, %18, %cst_11 {dimension_numbers = #tpu.dot_dimension_numbers<[1], [0], [0], [1], [0, 0, 1, 1], [], []>} : vector<320x40xbf16>, vector<40x128xbf16>, vector<320x128xf32> -> vector<320x128xf32>
    %c0_12 = arith.constant 0 : index
    %c0_13 = arith.constant 0 : index
    %20 = vector.load %arg4[%c0_12, %c0_13] : memref<1x128xf32, #tpu.memory_space<vmem>>, vector<1x128xf32>
    %21 = vector.broadcast %20 : vector<1x128xf32> to vector<320x128xf32>
    %22 = arith.addf %19, %21 : vector<320x128xf32>
    %c0_14 = arith.constant 0 : index
    %c0_15 = arith.constant 0 : index
    %23 = vector.load %arg5[%c0_14, %c0_15] : memref<320x128xf32, #tpu.memory_space<vmem>>, vector<320x128xf32>
    tpu.vector_store %arg5[%c0_14, %c0_15], %22 {strides = array<i32>} : memref<320x128xf32, #tpu.memory_space<vmem>>, vector<320x128xf32>,
    return
  }
}

</mosaic_0001>

<llo_original>
// kernel: model_forward.1
$region0: #{model_forward.1}
  #allocation0 [shape = 'u32[]', space=smem, size = 0x4, offset = 0x4, fixed_abs, tag = 'smem constant byte address 0x4 - core index']
  #allocation1 [shape = 'u32[144,128]{1,0:T(1,128)}', space=vmem, size = 0x12000, scoped, tag = 'internal scratch']
  %s0 = inlined_call_operand.vmem [shape: f32[2,8,40], index: 0, kind: input, shape index: {}]
  %s1 = inlined_call_operand.vmem [shape: f32[20,1,1], index: 1, kind: input, shape index: {}]
  %s2 = inlined_call_operand.vmem [shape: f32[20,1,1], index: 2, kind: input, shape index: {}]
  %s3 = inlined_call_operand.vmem [shape: bf16[40,128], index: 3, kind: input, shape index: {}]
  %s4 = inlined_call_operand.vmem [shape: f32[1,128], index: 4, kind: input, shape index: {}]
  %s5 = inlined_call_operand.vmem [shape: f32[320,128], index: 5, kind: output, shape index: {}]
  %s6 = sld [smem:[#allocation0]]
  $region30: #{model_forward.1} parent=0
    _
  %s8 = ssub.s32 1, %s6
  %s9 = scalar_select 0, %s8, %s6
  // Predicated region
  $region2: #{model_forward.1} parent=0 // pred_check
    _
  $region3: #{model_forward.1} parent=0 // pred_check_branch
    %11 = sbr.rel (0) target = $region5
  $region4: #{model_forward.1} parent=0 // pred_region
    _
  $region5: #{model_forward.1} parent=0 // pred_fallthru
    _
  // Predicated region
  $region6: #{model_forward.1} parent=0 // pred_check
    _
  $region7: #{model_forward.1} parent=0 // pred_check_branch
    %13 = sbr.rel (0) target = $region9
  $region8: #{model_forward.1} parent=0 // pred_region
    _
  $region9: #{model_forward.1} parent=0 // pred_fallthru
    _
  // Predicated region
  $region10: #{model_forward.1} parent=0 // pred_check
    _
  $region11: #{model_forward.1} parent=0 // pred_check_branch
    %15 = sbr.rel (0) target = $region13
  $region12: #{model_forward.1} parent=0 // pred_region
    _
  $region13: #{model_forward.1} parent=0 // pred_fallthru
    _
  // Predicated region
  $region14: #{model_forward.1} parent=0 // pred_check
    _
  $region15: #{model_forward.1} parent=0 // pred_check_branch
    %17 = sbr.rel (0) target = $region17
  $region16: #{model_forward.1} parent=0 // pred_region
    _
  $region17: #{model_forward.1} parent=0 // pred_fallthru
    _
  // Predicated region
  $region18: #{model_forward.1} parent=0 // pred_check
    _
  $region19: #{model_forward.1} parent=0 // pred_check_branch
    %19 = sbr.rel (0) target = $region21
  $region20: #{model_forward.1} parent=0 // pred_region
    _
  $region21: #{model_forward.1} parent=0 // pred_fallthru
    _
  %v21 = vld [vmem:[%s0] sm:$0xff]
  %v22 = vld [vmem:[%s0 + $0x8] sm:$0xff]
  %v23 = vld [vmem:[%s1] sm:$0x1]
  %v24 = vld [vmem:[%s1 + $0x1] sm:$0x1]
  %v25 = vld [vmem:[%s1 + $0x2] sm:$0x1]
  %v26 = vld [vmem:[%s1 + $0x3] sm:$0x1]
  %v27 = vld [vmem:[%s1 + $0x4] sm:$0x1]
  %v28 = vld [vmem:[%s1 + $0x5] sm:$0x1]
  %v29 = vld [vmem:[%s1 + $0x6] sm:$0x1]
  %v30 = vld [vmem:[%s1 + $0x7] sm:$0x1]
  %v31 = vld [vmem:[%s1 + $0x8] sm:$0x1]
  %v32 = vld [vmem:[%s1 + $0x9] sm:$0x1]
  %v33 = vld [vmem:[%s1 + $0xa] sm:$0x1]
  %v34 = vld [vmem:[%s1 + $0xb] sm:$0x1]
  %v35 = vld [vmem:[%s1 + $0xc] sm:$0x1]
  %v36 = vld [vmem:[%s1 + $0xd] sm:$0x1]
  %v37 = vld [vmem:[%s1 + $0xe] sm:$0x1]
  %v38 = vld [vmem:[%s1 + $0xf] sm:$0x1]
  %v39 = vld [vmem:[%s1 + $0x10] sm:$0x1]
  %v40 = vld [vmem:[%s1 + $0x11] sm:$0x1]
  %v41 = vld [vmem:[%s1 + $0x12] sm:$0x1]
  %v42 = vld [vmem:[%s1 + $0x13] sm:$0x1]
  %v63 = vlaneseq
  %v64 = vshrl.u32 %v63, 7
  %v65 = vsub.s32 0, %v64
  %v66 = vrot.slane %v23, %v65
  %v67 = vlaneseq
  %v68 = vshrl.u32 %v67, 7
  %v69 = vsub.s32 0, %v68
  %v70 = vrot.slane %v24, %v69
  %v71 = vlaneseq
  %v72 = vshrl.u32 %v71, 7
  %v73 = vsub.s32 0, %v72
  %v74 = vrot.slane %v25, %v73
  %v75 = vlaneseq
  %v76 = vshrl.u32 %v75, 7
  %v77 = vsub.s32 0, %v76
  %v78 = vrot.slane %v26, %v77
  %v79 = vlaneseq
  %v80 = vshrl.u32 %v79, 7
  %v81 = vsub.s32 0, %v80
  %v82 = vrot.slane %v27, %v81
  %v83 = vlaneseq
  %v84 = vshrl.u32 %v83, 7
  %v85 = vsub.s32 0, %v84
  %v86 = vrot.slane %v28, %v85
  %v87 = vlaneseq
  %v88 = vshrl.u32 %v87, 7
  %v89 = vsub.s32 0, %v88
  %v90 = vrot.slane %v29, %v89
  %v91 = vlaneseq
  %v92 = vshrl.u32 %v91, 7
  %v93 = vsub.s32 0, %v92
  %v94 = vrot.slane %v30, %v93
  %v95 = vlaneseq
  %v96 = vshrl.u32 %v95, 7
  %v97 = vsub.s32 0, %v96
  %v98 = vrot.slane %v31, %v97
  %v99 = vlaneseq
  %v100 = vshrl.u32 %v99, 7
  %v101 = vsub.s32 0, %v100
  %v102 = vrot.slane %v32, %v101
  %v103 = vlaneseq
  %v104 = vshrl.u32 %v103, 7
  %v105 = vsub.s32 0, %v104
  %v106 = vrot.slane %v33, %v105
  %v107 = vlaneseq
  %v108 = vshrl.u32 %v107, 7
  %v109 = vsub.s32 0, %v108
  %v110 = vrot.slane %v34, %v109
  %v111 = vlaneseq
  %v112 = vshrl.u32 %v111, 7
  %v113 = vsub.s32 0, %v112
  %v114 = vrot.slane %v35, %v113
  %v115 = vlaneseq
  %v116 = vshrl.u32 %v115, 7
  %v117 = vsub.s32 0, %v116
  %v118 = vrot.slane %v36, %v117
  %v119 = vlaneseq
  %v120 = vshrl.u32 %v119, 7
  %v121 = vsub.s32 0, %v120
  %v122 = vrot.slane %v37, %v121
  %v123 = vlaneseq
  %v124 = vshrl.u32 %v123, 7
  %v125 = vsub.s32 0, %v124
  %v126 = vrot.slane %v38, %v125
  %v127 = vlaneseq
  %v128 = vshrl.u32 %v127, 7
  %v129 = vsub.s32 0, %v128
  %v130 = vrot.slane %v39, %v129
  %v131 = vlaneseq
  %v132 = vshrl.u32 %v131, 7
  %v133 = vsub.s32 0, %v132
  %v134 = vrot.slane %v40, %v133
  %v135 = vlaneseq
  %v136 = vshrl.u32 %v135, 7
  %v137 = vsub.s32 0, %v136
  %v138 = vrot.slane %v41, %v137
  %v139 = vlaneseq
  %v140 = vshrl.u32 %v139, 7
  %v141 = vsub.s32 0, %v140
  %v142 = vrot.slane %v42, %v141
  %143 = vset.pattern.permute.xlu0 0
  %144 = vperm.xlu0 %143, %v66
  %v145 = vpop.permute.xlu0 %144
  %147 = vset.pattern.permute.xlu0 0
  %148 = vperm.xlu0 %147, %v70
  %v149 = vpop.permute.xlu0 %148
  %151 = vset.pattern.permute.xlu0 0
  %152 = vperm.xlu0 %151, %v74
  %v153 = vpop.permute.xlu0 %152
  %155 = vset.pattern.permute.xlu0 0
  %156 = vperm.xlu0 %155, %v78
  %v157 = vpop.permute.xlu0 %156
  %159 = vset.pattern.permute.xlu0 0
  %160 = vperm.xlu0 %159, %v82
  %v161 = vpop.permute.xlu0 %160
  %163 = vset.pattern.permute.xlu0 0
  %164 = vperm.xlu0 %163, %v86
  %v165 = vpop.permute.xlu0 %164
  %167 = vset.pattern.permute.xlu0 0
  %168 = vperm.xlu0 %167, %v90
  %v169 = vpop.permute.xlu0 %168
  %171 = vset.pattern.permute.xlu0 0
  %172 = vperm.xlu0 %171, %v94
  %v173 = vpop.permute.xlu0 %172
  %175 = vset.pattern.permute.xlu0 0
  %176 = vperm.xlu0 %175, %v98
  %v177 = vpop.permute.xlu0 %176
  %179 = vset.pattern.permute.xlu0 0
  %180 = vperm.xlu0 %179, %v102
  %v181 = vpop.permute.xlu0 %180
  %183 = vset.pattern.permute.xlu0 0
  %184 = vperm.xlu0 %183, %v106
  %v185 = vpop.permute.xlu0 %184
  %187 = vset.pattern.permute.xlu0 0
  %188 = vperm.xlu0 %187, %v110
  %v189 = vpop.permute.xlu0 %188
  %191 = vset.pattern.permute.xlu0 0
  %192 = vperm.xlu0 %191, %v114
  %v193 = vpop.permute.xlu0 %192
  %195 = vset.pattern.permute.xlu0 0
  %196 = vperm.xlu0 %195, %v118
  %v197 = vpop.permute.xlu0 %196
  %199 = vset.pattern.permute.xlu0 0
  %200 = vperm.xlu0 %199, %v122
  %v201 = vpop.permute.xlu0 %200
  %203 = vset.pattern.permute.xlu0 0
  %204 = vperm.xlu0 %203, %v126
  %v205 = vpop.permute.xlu0 %204
  %207 = vset.pattern.permute.xlu0 0
  %208 = vperm.xlu0 %207, %v130
  %v209 = vpop.permute.xlu0 %208
  %211 = vset.pattern.permute.xlu0 0
  %212 = vperm.xlu0 %211, %v134
  %v213 = vpop.permute.xlu0 %212
  %215 = vset.pattern.permute.xlu0 0
  %216 = vperm.xlu0 %215, %v138
  %v217 = vpop.permute.xlu0 %216
  %219 = vset.pattern.permute.xlu0 0
  %220 = vperm.xlu0 %219, %v142
  %v221 = vpop.permute.xlu0 %220
  %v223 = vmul.f32 %v21, %v145
  %v224 = vmul.f32 %v21, %v149
  %v225 = vmul.f32 %v21, %v153
  %v226 = vmul.f32 %v21, %v157
  %v227 = vmul.f32 %v21, %v161
  %v228 = vmul.f32 %v21, %v165
  %v229 = vmul.f32 %v21, %v169
  %v230 = vmul.f32 %v21, %v173
  %v231 = vmul.f32 %v21, %v177
  %v232 = vmul.f32 %v21, %v181
  %v233 = vmul.f32 %v21, %v185
  %v234 = vmul.f32 %v21, %v189
  %v235 = vmul.f32 %v21, %v193
  %v236 = vmul.f32 %v21, %v197
  %v237 = vmul.f32 %v21, %v201
  %v238 = vmul.f32 %v21, %v205
  %v239 = vmul.f32 %v21, %v209
  %v240 = vmul.f32 %v21, %v213
  %v241 = vmul.f32 %v21, %v217
  %v242 = vmul.f32 %v21, %v221
  %v243 = vmul.f32 %v22, %v145
  %v244 = vmul.f32 %v22, %v149
  %v245 = vmul.f32 %v22, %v153
  %v246 = vmul.f32 %v22, %v157
  %v247 = vmul.f32 %v22, %v161
  %v248 = vmul.f32 %v22, %v165
  %v249 = vmul.f32 %v22, %v169
  %v250 = vmul.f32 %v22, %v173
  %v251 = vmul.f32 %v22, %v177
  %v252 = vmul.f32 %v22, %v181
  %v253 = vmul.f32 %v22, %v185
  %v254 = vmul.f32 %v22, %v189
  %v255 = vmul.f32 %v22, %v193
  %v256 = vmul.f32 %v22, %v197
  %v257 = vmul.f32 %v22, %v201
  %v258 = vmul.f32 %v22, %v205
  %v259 = vmul.f32 %v22, %v209
  %v260 = vmul.f32 %v22, %v213
  %v261 = vmul.f32 %v22, %v217
  %v262 = vmul.f32 %v22, %v221
  %v263 = vld [vmem:[%s2] sm:$0x1]
  %v264 = vld [vmem:[%s2 + $0x1] sm:$0x1]
  %v265 = vld [vmem:[%s2 + $0x2] sm:$0x1]
  %v266 = vld [vmem:[%s2 + $0x3] sm:$0x1]
  %v267 = vld [vmem:[%s2 + $0x4] sm:$0x1]
  %v268 = vld [vmem:[%s2 + $0x5] sm:$0x1]
  %v269 = vld [vmem:[%s2 + $0x6] sm:$0x1]
  %v270 = vld [vmem:[%s2 + $0x7] sm:$0x1]
  %v271 = vld [vmem:[%s2 + $0x8] sm:$0x1]
  %v272 = vld [vmem:[%s2 + $0x9] sm:$0x1]
  %v273 = vld [vmem:[%s2 + $0xa] sm:$0x1]
  %v274 = vld [vmem:[%s2 + $0xb] sm:$0x1]
  %v275 = vld [vmem:[%s2 + $0xc] sm:$0x1]
  %v276 = vld [vmem:[%s2 + $0xd] sm:$0x1]
  %v277 = vld [vmem:[%s2 + $0xe] sm:$0x1]
  %v278 = vld [vmem:[%s2 + $0xf] sm:$0x1]
  %v279 = vld [vmem:[%s2 + $0x10] sm:$0x1]
  %v280 = vld [vmem:[%s2 + $0x11] sm:$0x1]
  %v281 = vld [vmem:[%s2 + $0x12] sm:$0x1]
  %v282 = vld [vmem:[%s2 + $0x13] sm:$0x1]
  %v303 = vlaneseq
  %v304 = vshrl.u32 %v303, 7
  %v305 = vsub.s32 0, %v304
  %v306 = vrot.slane %v263, %v305
  %v307 = vlaneseq
  %v308 = vshrl.u32 %v307, 7
  %v309 = vsub.s32 0, %v308
  %v310 = vrot.slane %v264, %v309
  %v311 = vlaneseq
  %v312 = vshrl.u32 %v311, 7
  %v313 = vsub.s32 0, %v312
  %v314 = vrot.slane %v265, %v313
  %v315 = vlaneseq
  %v316 = vshrl.u32 %v315, 7
  %v317 = vsub.s32 0, %v316
  %v318 = vrot.slane %v266, %v317
  %v319 = vlaneseq
  %v320 = vshrl.u32 %v319, 7
  %v321 = vsub.s32 0, %v320
  %v322 = vrot.slane %v267, %v321
  %v323 = vlaneseq
  %v324 = vshrl.u32 %v323, 7
  %v325 = vsub.s32 0, %v324
  %v326 = vrot.slane %v268, %v325
  %v327 = vlaneseq
  %v328 = vshrl.u32 %v327, 7
  %v329 = vsub.s32 0, %v328
  %v330 = vrot.slane %v269, %v329
  %v331 = vlaneseq
  %v332 = vshrl.u32 %v331, 7
  %v333 = vsub.s32 0, %v332
  %v334 = vrot.slane %v270, %v333
  %v335 = vlaneseq
  %v336 = vshrl.u32 %v335, 7
  %v337 = vsub.s32 0, %v336
  %v338 = vrot.slane %v271, %v337
  %v339 = vlaneseq
  %v340 = vshrl.u32 %v339, 7
  %v341 = vsub.s32 0, %v340
  %v342 = vrot.slane %v272, %v341
  %v343 = vlaneseq
  %v344 = vshrl.u32 %v343, 7
  %v345 = vsub.s32 0, %v344
  %v346 = vrot.slane %v273, %v345
  %v347 = vlaneseq
  %v348 = vshrl.u32 %v347, 7
  %v349 = vsub.s32 0, %v348
  %v350 = vrot.slane %v274, %v349
  %v351 = vlaneseq
  %v352 = vshrl.u32 %v351, 7
  %v353 = vsub.s32 0, %v352
  %v354 = vrot.slane %v275, %v353
  %v355 = vlaneseq
  %v356 = vshrl.u32 %v355, 7
  %v357 = vsub.s32 0, %v356
  %v358 = vrot.slane %v276, %v357
  %v359 = vlaneseq
  %v360 = vshrl.u32 %v359, 7
  %v361 = vsub.s32 0, %v360
  %v362 = vrot.slane %v277, %v361
  %v363 = vlaneseq
  %v364 = vshrl.u32 %v363, 7
  %v365 = vsub.s32 0, %v364
  %v366 = vrot.slane %v278, %v365
  %v367 = vlaneseq
  %v368 = vshrl.u32 %v367, 7
  %v369 = vsub.s32 0, %v368
  %v370 = vrot.slane %v279, %v369
  %v371 = vlaneseq
  %v372 = vshrl.u32 %v371, 7
  %v373 = vsub.s32 0, %v372
  %v374 = vrot.slane %v280, %v373
  %v375 = vlaneseq
  %v376 = vshrl.u32 %v375, 7
  %v377 = vsub.s32 0, %v376
  %v378 = vrot.slane %v281, %v377
  %v379 = vlaneseq
  %v380 = vshrl.u32 %v379, 7
  %v381 = vsub.s32 0, %v380
  %v382 = vrot.slane %v282, %v381
  %383 = vset.pattern.permute.xlu0 0
  %384 = vperm.xlu0 %383, %v306
  %v385 = vpop.permute.xlu0 %384
  %387 = vset.pattern.permute.xlu0 0
  %388 = vperm.xlu0 %387, %v310
  %v389 = vpop.permute.xlu0 %388
  %391 = vset.pattern.permute.xlu0 0
  %392 = vperm.xlu0 %391, %v314
  %v393 = vpop.permute.xlu0 %392
  %395 = vset.pattern.permute.xlu0 0
  %396 = vperm.xlu0 %395, %v318
  %v397 = vpop.permute.xlu0 %396
  %399 = vset.pattern.permute.xlu0 0
  %400 = vperm.xlu0 %399, %v322
  %v401 = vpop.permute.xlu0 %400
  %403 = vset.pattern.permute.xlu0 0
  %404 = vperm.xlu0 %403, %v326
  %v405 = vpop.permute.xlu0 %404
  %407 = vset.pattern.permute.xlu0 0
  %408 = vperm.xlu0 %407, %v330
  %v409 = vpop.permute.xlu0 %408
  %411 = vset.pattern.permute.xlu0 0
  %412 = vperm.xlu0 %411, %v334
  %v413 = vpop.permute.xlu0 %412
  %415 = vset.pattern.permute.xlu0 0
  %416 = vperm.xlu0 %415, %v338
  %v417 = vpop.permute.xlu0 %416
  %419 = vset.pattern.permute.xlu0 0
  %420 = vperm.xlu0 %419, %v342
  %v421 = vpop.permute.xlu0 %420
  %423 = vset.pattern.permute.xlu0 0
  %424 = vperm.xlu0 %423, %v346
  %v425 = vpop.permute.xlu0 %424
  %427 = vset.pattern.permute.xlu0 0
  %428 = vperm.xlu0 %427, %v350
  %v429 = vpop.permute.xlu0 %428
  %431 = vset.pattern.permute.xlu0 0
  %432 = vperm.xlu0 %431, %v354
  %v433 = vpop.permute.xlu0 %432
  %435 = vset.pattern.permute.xlu0 0
  %436 = vperm.xlu0 %435, %v358
  %v437 = vpop.permute.xlu0 %436
  %439 = vset.pattern.permute.xlu0 0
  %440 = vperm.xlu0 %439, %v362
  %v441 = vpop.permute.xlu0 %440
  %443 = vset.pattern.permute.xlu0 0
  %444 = vperm.xlu0 %443, %v366
  %v445 = vpop.permute.xlu0 %444
  %447 = vset.pattern.permute.xlu0 0
  %448 = vperm.xlu0 %447, %v370
  %v449 = vpop.permute.xlu0 %448
  %451 = vset.pattern.permute.xlu0 0
  %452 = vperm.xlu0 %451, %v374
  %v453 = vpop.permute.xlu0 %452
  %455 = vset.pattern.permute.xlu0 0
  %456 = vperm.xlu0 %455, %v378
  %v457 = vpop.permute.xlu0 %456
  %459 = vset.pattern.permute.xlu0 0
  %460 = vperm.xlu0 %459, %v382
  %v461 = vpop.permute.xlu0 %460
  %v463 = vadd.f32 %v223, %v385
  %v464 = vadd.f32 %v224, %v389
  %v465 = vadd.f32 %v225, %v393
  %v466 = vadd.f32 %v226, %v397
  %v467 = vadd.f32 %v227, %v401
  %v468 = vadd.f32 %v228, %v405
  %v469 = vadd.f32 %v229, %v409
  %v470 = vadd.f32 %v230, %v413
  %v471 = vadd.f32 %v231, %v417
  %v472 = vadd.f32 %v232, %v421
  %v473 = vadd.f32 %v233, %v425
  %v474 = vadd.f32 %v234, %v429
  %v475 = vadd.f32 %v235, %v433
  %v476 = vadd.f32 %v236, %v437
  %v477 = vadd.f32 %v237, %v441
  %v478 = vadd.f32 %v238, %v445
  %v479 = vadd.f32 %v239, %v449
  %v480 = vadd.f32 %v240, %v453
  %v481 = vadd.f32 %v241, %v457
  %v482 = vadd.f32 %v242, %v461
  %v483 = vadd.f32 %v243, %v385
  %v484 = vadd.f32 %v244, %v389
  %v485 = vadd.f32 %v245, %v393
  %v486 = vadd.f32 %v246, %v397
  %v487 = vadd.f32 %v247, %v401
  %v488 = vadd.f32 %v248, %v405
  %v489 = vadd.f32 %v249, %v409
  %v490 = vadd.f32 %v250, %v413
  %v491 = vadd.f32 %v251, %v417
  %v492 = vadd.f32 %v252, %v421
  %v493 = vadd.f32 %v253, %v425
  %v494 = vadd.f32 %v254, %v429
  %v495 = vadd.f32 %v255, %v433
  %v496 = vadd.f32 %v256, %v437
  %v497 = vadd.f32 %v257, %v441
  %v498 = vadd.f32 %v258, %v445
  %v499 = vadd.f32 %v259, %v449
  %v500 = vadd.f32 %v260, %v453
  %v501 = vadd.f32 %v261, %v457
  %v502 = vadd.f32 %v262, %v461
  %vm503 = vcmp.gt.f32.partialorder %v463, 0.0
  %vm504 = vcmp.gt.f32.partialorder %v464, 0.0
  %vm505 = vcmp.gt.f32.partialorder %v465, 0.0
  %vm506 = vcmp.gt.f32.partialorder %v466, 0.0
  %vm507 = vcmp.gt.f32.partialorder %v467, 0.0
  %vm508 = vcmp.gt.f32.partialorder %v468, 0.0
  %vm509 = vcmp.gt.f32.partialorder %v469, 0.0
  %vm510 = vcmp.gt.f32.partialorder %v470, 0.0
  %vm511 = vcmp.gt.f32.partialorder %v471, 0.0
  %vm512 = vcmp.gt.f32.partialorder %v472, 0.0
  %vm513 = vcmp.gt.f32.partialorder %v473, 0.0
  %vm514 = vcmp.gt.f32.partialorder %v474, 0.0
  %vm515 = vcmp.gt.f32.partialorder %v475, 0.0
  %vm516 = vcmp.gt.f32.partialorder %v476, 0.0
  %vm517 = vcmp.gt.f32.partialorder %v477, 0.0
  %vm518 = vcmp.gt.f32.partialorder %v478, 0.0
  %vm519 = vcmp.gt.f32.partialorder %v479, 0.0
  %vm520 = vcmp.gt.f32.partialorder %v480, 0.0
  %vm521 = vcmp.gt.f32.partialorder %v481, 0.0
  %vm522 = vcmp.gt.f32.partialorder %v482, 0.0
  %vm523 = vcmp.gt.f32.partialorder %v483, 0.0
  %vm524 = vcmp.gt.f32.partialorder %v484, 0.0
  %vm525 = vcmp.gt.f32.partialorder %v485, 0.0
  %vm526 = vcmp.gt.f32.partialorder %v486, 0.0
  %vm527 = vcmp.gt.f32.partialorder %v487, 0.0
  %vm528 = vcmp.gt.f32.partialorder %v488, 0.0
  %vm529 = vcmp.gt.f32.partialorder %v489, 0.0
  %vm530 = vcmp.gt.f32.partialorder %v490, 0.0
  %vm531 = vcmp.gt.f32.partialorder %v491, 0.0
  %vm532 = vcmp.gt.f32.partialorder %v492, 0.0
  %vm533 = vcmp.gt.f32.partialorder %v493, 0.0
  %vm534 = vcmp.gt.f32.partialorder %v494, 0.0
  %vm535 = vcmp.gt.f32.partialorder %v495, 0.0
  %vm536 = vcmp.gt.f32.partialorder %v496, 0.0
  %vm537 = vcmp.gt.f32.partialorder %v497, 0.0
  %vm538 = vcmp.gt.f32.partialorder %v498, 0.0
  %vm539 = vcmp.gt.f32.partialorder %v499, 0.0
  %vm540 = vcmp.gt.f32.partialorder %v500, 0.0
  %vm541 = vcmp.gt.f32.partialorder %v501, 0.0
  %vm542 = vcmp.gt.f32.partialorder %v502, 0.0
  %v543 = vmul.f32 %v463, 0.45
  %v544 = vmul.f32 %v464, 0.45
  %v545 = vmul.f32 %v465, 0.45
  %v546 = vmul.f32 %v466, 0.45
  %v547 = vmul.f32 %v467, 0.45
  %v548 = vmul.f32 %v468, 0.45
  %v549 = vmul.f32 %v469, 0.45
  %v550 = vmul.f32 %v470, 0.45
  %v551 = vmul.f32 %v471, 0.45
  %v552 = vmul.f32 %v472, 0.45
  %v553 = vmul.f32 %v473, 0.45
  %v554 = vmul.f32 %v474, 0.45
  %v555 = vmul.f32 %v475, 0.45
  %v556 = vmul.f32 %v476, 0.45
  %v557 = vmul.f32 %v477, 0.45
  %v558 = vmul.f32 %v478, 0.45
  %v559 = vmul.f32 %v479, 0.45
  %v560 = vmul.f32 %v480, 0.45
  %v561 = vmul.f32 %v481, 0.45
  %v562 = vmul.f32 %v482, 0.45
  %v563 = vmul.f32 %v483, 0.45
  %v564 = vmul.f32 %v484, 0.45
  %v565 = vmul.f32 %v485, 0.45
  %v566 = vmul.f32 %v486, 0.45
  %v567 = vmul.f32 %v487, 0.45
  %v568 = vmul.f32 %v488, 0.45
  %v569 = vmul.f32 %v489, 0.45
  %v570 = vmul.f32 %v490, 0.45
  %v571 = vmul.f32 %v491, 0.45
  %v572 = vmul.f32 %v492, 0.45
  %v573 = vmul.f32 %v493, 0.45
  %v574 = vmul.f32 %v494, 0.45
  %v575 = vmul.f32 %v495, 0.45
  %v576 = vmul.f32 %v496, 0.45
  %v577 = vmul.f32 %v497, 0.45
  %v578 = vmul.f32 %v498, 0.45
  %v579 = vmul.f32 %v499, 0.45
  %v580 = vmul.f32 %v500, 0.45
  %v581 = vmul.f32 %v501, 0.45
  %v582 = vmul.f32 %v502, 0.45
  %v583 = vsel %vm503, %v463, %v543
  %v584 = vsel %vm504, %v464, %v544
  %v585 = vsel %vm505, %v465, %v545
  %v586 = vsel %vm506, %v466, %v546
  %v587 = vsel %vm507, %v467, %v547
  %v588 = vsel %vm508, %v468, %v548
  %v589 = vsel %vm509, %v469, %v549
  %v590 = vsel %vm510, %v470, %v550
  %v591 = vsel %vm511, %v471, %v551
  %v592 = vsel %vm512, %v472, %v552
  %v593 = vsel %vm513, %v473, %v553
  %v594 = vsel %vm514, %v474, %v554
  %v595 = vsel %vm515, %v475, %v555
  %v596 = vsel %vm516, %v476, %v556
  %v597 = vsel %vm517, %v477, %v557
  %v598 = vsel %vm518, %v478, %v558
  %v599 = vsel %vm519, %v479, %v559
  %v600 = vsel %vm520, %v480, %v560
  %v601 = vsel %vm521, %v481, %v561
  %v602 = vsel %vm522, %v482, %v562
  %v603 = vsel %vm523, %v483, %v563
  %v604 = vsel %vm524, %v484, %v564
  %v605 = vsel %vm525, %v485, %v565
  %v606 = vsel %vm526, %v486, %v566
  %v607 = vsel %vm527, %v487, %v567
  %v608 = vsel %vm528, %v488, %v568
  %v609 = vsel %vm529, %v489, %v569
  %v610 = vsel %vm530, %v490, %v570
  %v611 = vsel %vm531, %v491, %v571
  %v612 = vsel %vm532, %v492, %v572
  %v613 = vsel %vm533, %v493, %v573
  %v614 = vsel %vm534, %v494, %v574
  %v615 = vsel %vm535, %v495, %v575
  %v616 = vsel %vm536, %v496, %v576
  %v617 = vsel %vm537, %v497, %v577
  %v618 = vsel %vm538, %v498, %v578
  %v619 = vsel %vm539, %v499, %v579
  %v620 = vsel %vm540, %v500, %v580
  %v621 = vsel %vm541, %v501, %v581
  %v622 = vsel %vm542, %v502, %v582
  %v623 = vpack.c.bf16 %v584, %v583
  %v624 = vpack.c.bf16 %v586, %v585
  %v625 = vpack.c.bf16 %v588, %v587
  %v626 = vpack.c.bf16 %v590, %v589
  %v627 = vpack.c.bf16 %v592, %v591
  %v628 = vpack.c.bf16 %v594, %v593
  %v629 = vpack.c.bf16 %v596, %v595
  %v630 = vpack.c.bf16 %v598, %v597
  %v631 = vpack.c.bf16 %v600, %v599
  %v632 = vpack.c.bf16 %v602, %v601
  %v633 = vpack.c.bf16 %v604, %v603
  %v634 = vpack.c.bf16 %v606, %v605
  %v635 = vpack.c.bf16 %v608, %v607
  %v636 = vpack.c.bf16 %v610, %v609
  %v637 = vpack.c.bf16 %v612, %v611
  %v638 = vpack.c.bf16 %v614, %v613
  %v639 = vpack.c.bf16 %v616, %v615
  %v640 = vpack.c.bf16 %v618, %v617
  %v641 = vpack.c.bf16 %v620, %v619
  %v642 = vpack.c.bf16 %v622, %v621
  %v643 = vld [vmem:[%s3] sm:$0xf]
  %v644 = vld [vmem:[%s3 + $0x4] sm:$0xf]
  %v645 = vld [vmem:[%s3 + $0x8] sm:$0xf]
  %v646 = vld [vmem:[%s3 + $0xc] sm:$0xf]
  %v647 = vld [vmem:[%s3 + $0x10] sm:$0xf]
  %v648 = vld [vmem:[%s4] sm:$0x1]
  %v650 = vlaneseq
  %v651 = vshrl.u32 %v650, 7
  %v652 = vsub.s32 0, %v651
  %v653 = vrot.slane %v648, %v652
  %v660 = vunpack.c.l.b16 %v643
  %v661 = vunpack.c.l.b16 %v644
  %v662 = vunpack.c.l.b16 %v645
  %v663 = vunpack.c.l.b16 %v646
  %v664 = vunpack.c.l.b16 %v647
  %v665 = vpack.c.b16 %v661, %v660
  %v666 = vpack.c.b16 %v663, %v662
  %v667 = vpack.c.b16 %v664, %v664
  %vm670 = vcmask 326656
  %v672 = vsel %vm670, %v623, 0
  %v675 = vsel %vm670, %v624, 0
  %v678 = vsel %vm670, %v625, 0
  %v681 = vsel %vm670, %v626, 0
  %v684 = vsel %vm670, %v627, 0
  %v687 = vsel %vm670, %v628, 0
  %v690 = vsel %vm670, %v629, 0
  %v693 = vsel %vm670, %v630, 0
  %v696 = vsel %vm670, %v631, 0
  %v699 = vsel %vm670, %v632, 0
  %v702 = vsel %vm670, %v633, 0
  %v705 = vsel %vm670, %v634, 0
  %v708 = vsel %vm670, %v635, 0
  %v711 = vsel %vm670, %v636, 0
  %v714 = vsel %vm670, %v637, 0
  %v717 = vsel %vm670, %v638, 0
  %v720 = vsel %vm670, %v639, 0
  %v723 = vsel %vm670, %v640, 0
  %v726 = vsel %vm670, %v641, 0
  %v729 = vsel %vm670, %v642, 0
  %vm731 = vcmask 1043456
  %v733 = vsel %vm731, %v667, 0
  %735 = vmatprep.subr.bf16.mxu0 0
  %736 = vmatpush1.bf16.msra.mxu0 0
  %737 = vmatprep.subr.bf16.mxu0 0
  %738 = vmatpush1.bf16.msra.mxu0 0
  %739 = vmatprep.subr.bf16.mxu0 0
  %740 = vmatpush1.bf16.msra.mxu0 0
  %741 = vmatprep.subr.bf16.mxu0 0
  %742 = vmatpush1.bf16.msra.mxu0 0
  %743 = vmatprep.subr.bf16.mxu0 0
  %744 = vmatpush1.bf16.msra.mxu0 0
  %745 = vmatprep.subr.bf16.mxu0 0
  %746 = vmatpush1.bf16.msra.mxu0 %v733
  %747 = vmatprep.subr.bf16.mxu0 0
  %748 = vmatpush1.bf16.msra.mxu0 %v666
  %749 = vmatprep.subr.bf16.mxu0 0
  %750 = vmatpush1.bf16.msra.mxu0 %v665
  %751 = vmatprep.subr.bf16.mxu0 0
  %752 = vmatpush2.bf16.msra.mxu0 0
  %753 = vmatprep.subr.bf16.mxu0 0
  %754 = vmatpush2.bf16.msra.mxu0 0
  %755 = vmatprep.subr.bf16.mxu0 0
  %756 = vmatpush2.bf16.msra.mxu0 0
  %757 = vmatprep.subr.bf16.mxu0 0
  %758 = vmatpush2.bf16.msra.mxu0 0
  %759 = vmatprep.subr.bf16.mxu0 0
  %760 = vmatpush2.bf16.msra.mxu0 0
  %761 = vmatprep.subr.bf16.mxu0 0
  %762 = vmatpush2.bf16.msra.mxu0 0
  %763 = vmatprep.subr.bf16.mxu0 0
  %764 = vmatpush2.bf16.msra.mxu0 0
  %765 = vmatprep.subr.bf16.mxu0 0
  %766 = vmatpush2.bf16.msra.mxu0 0
  %767 = vmatprep.mubr.bf16.mxu0 0
  %768 = vmatmul.mubr.bf16.gmra.mxu0 %v672
  %v769 = vpop.f32.mrf.mxu0
  %v770 = vadd.f32 %v653, %v769
  %v771 = vpop.f32.mrf.mxu0
  %v772 = vpop.f32.mrf.mxu0
  %v773 = vadd.f32 %v653, %v772
  %v774 = vpop.f32.mrf.mxu0
  %775 = vmatprep.mubr.bf16.mxu0 0
  %776 = vmatmul.mubr.bf16.gmra.mxu0 %v675
  %v777 = vpop.f32.mrf.mxu0
  %v778 = vadd.f32 %v653, %v777
  %v779 = vpop.f32.mrf.mxu0
  %v780 = vpop.f32.mrf.mxu0
  %v781 = vadd.f32 %v653, %v780
  %v782 = vpop.f32.mrf.mxu0
  %783 = vmatprep.mubr.bf16.mxu0 0
  %784 = vmatmul.mubr.bf16.gmra.mxu0 %v678
  %v785 = vpop.f32.mrf.mxu0
  %v786 = vadd.f32 %v653, %v785
  %v787 = vpop.f32.mrf.mxu0
  %v788 = vpop.f32.mrf.mxu0
  %v789 = vadd.f32 %v653, %v788
  %v790 = vpop.f32.mrf.mxu0
  %791 = vmatprep.mubr.bf16.mxu0 0
  %792 = vmatmul.mubr.bf16.gmra.mxu0 %v681
  %v793 = vpop.f32.mrf.mxu0
  %v794 = vadd.f32 %v653, %v793
  %v795 = vpop.f32.mrf.mxu0
  %v796 = vpop.f32.mrf.mxu0
  %v797 = vadd.f32 %v653, %v796
  %v798 = vpop.f32.mrf.mxu0
  %799 = vmatprep.mubr.bf16.mxu0 0
  %800 = vmatmul.mubr.bf16.gmra.mxu0 %v684
  %v801 = vpop.f32.mrf.mxu0
  %v802 = vadd.f32 %v653, %v801
  %v803 = vpop.f32.mrf.mxu0
  %v804 = vpop.f32.mrf.mxu0
  %v805 = vadd.f32 %v653, %v804
  %v806 = vpop.f32.mrf.mxu0
  %807 = vmatprep.mubr.bf16.mxu0 0
  %808 = vmatmul.mubr.bf16.gmra.mxu0 %v687
  %v809 = vpop.f32.mrf.mxu0
  %v810 = vadd.f32 %v653, %v809
  %v811 = vpop.f32.mrf.mxu0
  %v812 = vpop.f32.mrf.mxu0
  %v813 = vadd.f32 %v653, %v812
  %v814 = vpop.f32.mrf.mxu0
  %815 = vmatprep.mubr.bf16.mxu0 0
  %816 = vmatmul.mubr.bf16.gmra.mxu0 %v690
  %v817 = vpop.f32.mrf.mxu0
  %v818 = vadd.f32 %v653, %v817
  %v819 = vpop.f32.mrf.mxu0
  %v820 = vpop.f32.mrf.mxu0
  %v821 = vadd.f32 %v653, %v820
  %v822 = vpop.f32.mrf.mxu0
  %823 = vmatprep.mubr.bf16.mxu0 0
  %824 = vmatmul.mubr.bf16.gmra.mxu0 %v693
  %v825 = vpop.f32.mrf.mxu0
  %v826 = vadd.f32 %v653, %v825
  %v827 = vpop.f32.mrf.mxu0
  %v828 = vpop.f32.mrf.mxu0
  %v829 = vadd.f32 %v653, %v828
  %v830 = vpop.f32.mrf.mxu0
  %831 = vmatprep.mubr.bf16.mxu0 0
  %832 = vmatmul.mubr.bf16.gmra.mxu0 %v696
  %v833 = vpop.f32.mrf.mxu0
  %v834 = vadd.f32 %v653, %v833
  %v835 = vpop.f32.mrf.mxu0
  %v836 = vpop.f32.mrf.mxu0
  %v837 = vadd.f32 %v653, %v836
  %v838 = vpop.f32.mrf.mxu0
  %839 = vmatprep.mubr.bf16.mxu0 0
  %840 = vmatmul.mubr.bf16.gmra.mxu0 %v699
  %v841 = vpop.f32.mrf.mxu0
  %v842 = vadd.f32 %v653, %v841
  %v843 = vpop.f32.mrf.mxu0
  %v844 = vpop.f32.mrf.mxu0
  %v845 = vadd.f32 %v653, %v844
  %v846 = vpop.f32.mrf.mxu0
  %847 = vmatprep.mubr.bf16.mxu0 0
  %848 = vmatmul.mubr.bf16.gmra.mxu0 %v702
  %v849 = vpop.f32.mrf.mxu0
  %v850 = vadd.f32 %v653, %v849
  %v851 = vpop.f32.mrf.mxu0
  %v852 = vpop.f32.mrf.mxu0
  %v853 = vadd.f32 %v653, %v852
  %v854 = vpop.f32.mrf.mxu0
  %855 = vmatprep.mubr.bf16.mxu0 0
  %856 = vmatmul.mubr.bf16.gmra.mxu0 %v705
  %v857 = vpop.f32.mrf.mxu0
  %v858 = vadd.f32 %v653, %v857
  %v859 = vpop.f32.mrf.mxu0
  %v860 = vpop.f32.mrf.mxu0
  %v861 = vadd.f32 %v653, %v860
  %v862 = vpop.f32.mrf.mxu0
  %863 = vmatprep.mubr.bf16.mxu0 0
  %864 = vmatmul.mubr.bf16.gmra.mxu0 %v708
  %v865 = vpop.f32.mrf.mxu0
  %v866 = vadd.f32 %v653, %v865
  %v867 = vpop.f32.mrf.mxu0
  %v868 = vpop.f32.mrf.mxu0
  %v869 = vadd.f32 %v653, %v868
  %v870 = vpop.f32.mrf.mxu0
  %871 = vmatprep.mubr.bf16.mxu0 0
  %872 = vmatmul.mubr.bf16.gmra.mxu0 %v711
  %v873 = vpop.f32.mrf.mxu0
  %v874 = vadd.f32 %v653, %v873
  %v875 = vpop.f32.mrf.mxu0
  %v876 = vpop.f32.mrf.mxu0
  %v877 = vadd.f32 %v653, %v876
  %v878 = vpop.f32.mrf.mxu0
  %879 = vmatprep.mubr.bf16.mxu0 0
  %880 = vmatmul.mubr.bf16.gmra.mxu0 %v714
  %v881 = vpop.f32.mrf.mxu0
  %v882 = vadd.f32 %v653, %v881
  %v883 = vpop.f32.mrf.mxu0
  %v884 = vpop.f32.mrf.mxu0
  %v885 = vadd.f32 %v653, %v884
  %v886 = vpop.f32.mrf.mxu0
  %887 = vmatprep.mubr.bf16.mxu0 0
  %888 = vmatmul.mubr.bf16.gmra.mxu0 %v717
  %v889 = vpop.f32.mrf.mxu0
  %v890 = vadd.f32 %v653, %v889
  %v891 = vpop.f32.mrf.mxu0
  %v892 = vpop.f32.mrf.mxu0
  %v893 = vadd.f32 %v653, %v892
  %v894 = vpop.f32.mrf.mxu0
  %895 = vmatprep.mubr.bf16.mxu0 0
  %896 = vmatmul.mubr.bf16.gmra.mxu0 %v720
  %v897 = vpop.f32.mrf.mxu0
  %v898 = vadd.f32 %v653, %v897
  %v899 = vpop.f32.mrf.mxu0
  %v900 = vpop.f32.mrf.mxu0
  %v901 = vadd.f32 %v653, %v900
  %v902 = vpop.f32.mrf.mxu0
  %903 = vmatprep.mubr.bf16.mxu0 0
  %904 = vmatmul.mubr.bf16.gmra.mxu0 %v723
  %v905 = vpop.f32.mrf.mxu0
  %v906 = vadd.f32 %v653, %v905
  %v907 = vpop.f32.mrf.mxu0
  %v908 = vpop.f32.mrf.mxu0
  %v909 = vadd.f32 %v653, %v908
  %v910 = vpop.f32.mrf.mxu0
  %911 = vmatprep.mubr.bf16.mxu0 0
  %912 = vmatmul.mubr.bf16.gmra.mxu0 %v726
  %v913 = vpop.f32.mrf.mxu0
  %v914 = vadd.f32 %v653, %v913
  %v915 = vpop.f32.mrf.mxu0
  %v916 = vpop.f32.mrf.mxu0
  %v917 = vadd.f32 %v653, %v916
  %v918 = vpop.f32.mrf.mxu0
  %919 = vmatprep.mubr.bf16.mxu0 0
  %920 = vmatmul.mubr.bf16.gmra.mxu0 %v729
  %v921 = vpop.f32.mrf.mxu0
  %v922 = vadd.f32 %v653, %v921
  %v923 = vpop.f32.mrf.mxu0
  %v924 = vpop.f32.mrf.mxu0
  %v925 = vadd.f32 %v653, %v924
  %v926 = vpop.f32.mrf.mxu0
  %927 = vdwg.mxu0
  %928 = vst [vmem:[%s5] sm:$0xff] %v770
  %929 = vst [vmem:[%s5 + $0x8] sm:$0xff] %v773
  %930 = vst [vmem:[%s5 + $0x10] sm:$0xff] %v778
  %931 = vst [vmem:[%s5 + $0x18] sm:$0xff] %v781
  %932 = vst [vmem:[%s5 + $0x20] sm:$0xff] %v786
  %933 = vst [vmem:[%s5 + $0x28] sm:$0xff] %v789
  %934 = vst [vmem:[%s5 + $0x30] sm:$0xff] %v794
  %935 = vst [vmem:[%s5 + $0x38] sm:$0xff] %v797
  %936 = vst [vmem:[%s5 + $0x40] sm:$0xff] %v802
  %937 = vst [vmem:[%s5 + $0x48] sm:$0xff] %v805
  %938 = vst [vmem:[%s5 + $0x50] sm:$0xff] %v810
  %939 = vst [vmem:[%s5 + $0x58] sm:$0xff] %v813
  %940 = vst [vmem:[%s5 + $0x60] sm:$0xff] %v818
  %941 = vst [vmem:[%s5 + $0x68] sm:$0xff] %v821
  %942 = vst [vmem:[%s5 + $0x70] sm:$0xff] %v826
  %943 = vst [vmem:[%s5 + $0x78] sm:$0xff] %v829
  %944 = vst [vmem:[%s5 + $0x80] sm:$0xff] %v834
  %945 = vst [vmem:[%s5 + $0x88] sm:$0xff] %v837
  %946 = vst [vmem:[%s5 + $0x90] sm:$0xff] %v842
  %947 = vst [vmem:[%s5 + $0x98] sm:$0xff] %v845
  %948 = vst [vmem:[%s5 + $0xa0] sm:$0xff] %v850
  %949 = vst [vmem:[%s5 + $0xa8] sm:$0xff] %v853
  %950 = vst [vmem:[%s5 + $0xb0] sm:$0xff] %v858
  %951 = vst [vmem:[%s5 + $0xb8] sm:$0xff] %v861
  %952 = vst [vmem:[%s5 + $0xc0] sm:$0xff] %v866
  %953 = vst [vmem:[%s5 + $0xc8] sm:$0xff] %v869
  %954 = vst [vmem:[%s5 + $0xd0] sm:$0xff] %v874
  %955 = vst [vmem:[%s5 + $0xd8] sm:$0xff] %v877
  %956 = vst [vmem:[%s5 + $0xe0] sm:$0xff] %v882
  %957 = vst [vmem:[%s5 + $0xe8] sm:$0xff] %v885
  %958 = vst [vmem:[%s5 + $0xf0] sm:$0xff] %v890
  %959 = vst [vmem:[%s5 + $0xf8] sm:$0xff] %v893
  %960 = vst [vmem:[%s5 + $0x100] sm:$0xff] %v898
  %961 = vst [vmem:[%s5 + $0x108] sm:$0xff] %v901
  %962 = vst [vmem:[%s5 + $0x110] sm:$0xff] %v906
  %963 = vst [vmem:[%s5 + $0x118] sm:$0xff] %v909
  %964 = vst [vmem:[%s5 + $0x120] sm:$0xff] %v914
  %965 = vst [vmem:[%s5 + $0x128] sm:$0xff] %v917
  %966 = vst [vmem:[%s5 + $0x130] sm:$0xff] %v922
  %967 = vst [vmem:[%s5 + $0x138] sm:$0xff] %v925
  // Predicated region
  $region22: #{model_forward.1} parent=0 // pred_check
    _
  $region23: #{model_forward.1} parent=0 // pred_check_branch
    %969 = sbr.rel (0) target = $region25
  $region24: #{model_forward.1} parent=0 // pred_region
    _
  $region25: #{model_forward.1} parent=0 // pred_fallthru
    _
  // Predicated region
  $region26: #{model_forward.1} parent=0 // pred_check
    _
  $region27: #{model_forward.1} parent=0 // pred_check_branch
    %971 = sbr.rel (0) target = $region29
  $region28: #{model_forward.1} parent=0 // pred_region
    _
  $region29: #{model_forward.1} parent=0 // pred_fallthru
    _

</llo_original>
